<compile_context>
chip_gen: v5e
topology: v5e:2x2
jax: 0.10.0
libtpu: 0.0.40
codegen_flags: <defaults>
</compile_context>

<pallas_src>
import functools
import math

import jax
import jax.numpy as jnp
from jax.experimental import pallas as pl
from jax.experimental.pallas import tpu as pltpu

_LANE = 128


# --------------------------------------------------------------------------- #
# hardware queries / helpers
# --------------------------------------------------------------------------- #
def _tpu_query():
    """Return (per-TensorCore VMEM capacity bytes, #TensorCores per chip)."""
    cap = 64 << 20  # conservative default (v7x per-TC VMEM)
    cores = 1
    try:
        info = pltpu.get_tpu_info()
        c = getattr(info, "vmem_capacity_bytes", None)
        if c:
            cap = int(c)
        for name in ("num_tensorcores", "tensorcore_count", "num_cores",
                     "cores_per_chip", "core_count"):
            v = getattr(info, name, None)
            if v:
                cores = max(1, int(v))
                break
    except Exception:
        pass
    # Guard: if a multi-TC chip (v7x-class) reports per-chip VMEM, convert to per-core.
    if cores > 1 and cap > (64 << 20):
        cap //= cores
    cap = max(16 << 20, min(cap, 128 << 20))
    return cap, cores


def _compiler_params(dimension_semantics, needed_bytes, vmem_cap):
    limit = max(int(needed_bytes), 32 << 20)
    limit = min(limit, int(vmem_cap * 0.95))
    return pltpu.CompilerParams(
        dimension_semantics=dimension_semantics,
        vmem_limit_bytes=int(limit),
    )


def _ceil_div(a, b):
    return -(-a // b)


def _spatial_tile(hw, max_lanes):
    """Largest lane-dense (multiple-of-128) spatial tile <= max_lanes, else full hw."""
    if hw <= max_lanes:
        return hw
    t = (max_lanes // _LANE) * _LANE
    return max(t, _LANE)


def _channel_mix(y, w, use_mxu):
    """y: (TB, C) pooled values (f32); w: (C_out, C_in) center tap -> y @ w.T."""
    if use_mxu:
        return jax.lax.dot_general(
            y, w,
            dimension_numbers=(((1,), (1,)), ((), ())),
            preferred_element_type=jnp.float32)
    # Tiny C: broadcast-mul + lane reduce on the VPU/XLU; skips the MXU entirely.
    return jnp.sum(y[:, None, :] * w[None, :, :], axis=-1)


# --------------------------------------------------------------------------- #
# kernels
# --------------------------------------------------------------------------- #
def _eca_fused_kernel(x_ref, w_ref, o_ref, *, use_mxu):
    """Single pass: pool + channel mix + sigmoid + rescale for TB batch elems."""
    # Pooled mean in f32 (streaming cast -> reduce; no persistent f32 tile).
    y = jnp.mean(x_ref[...].astype(jnp.float32), axis=-1)        # (TB, C)
    s = jax.nn.sigmoid(_channel_mix(y, w_ref[...], use_mxu))      # (TB, C)
    # Fresh re-read of x so no full-tile f32 copy stays live across the mix.
    o_ref[...] = (x_ref[...].astype(jnp.float32) * s[:, :, None]).astype(o_ref.dtype)


def _eca_scale_kernel(x_ref, w_ref, s_ref, acc_ref, *,
                      hw, inv_hw, use_mxu, need_mask):
    """Pass 1 (spatially tiled path): accumulate spatial sums; on the last
    spatial step emit the sigmoid(channel_mix(mean)) scale (TB, C, 1)."""
    si = pl.program_id(1)

    @pl.when(si == 0)
    def _init():
        acc_ref[...] = jnp.zeros_like(acc_ref)

    xv = x_ref[...].astype(jnp.float32)                           # (TB, C, thw)
    if need_mask:
        thw = x_ref.shape[-1]
        col = si * thw + jax.lax.broadcasted_iota(jnp.int32, x_ref.shape, 2)
        xv = jnp.where(col < hw, xv, 0.0)                         # mask ragged tail
    acc_ref[...] += jnp.sum(xv, axis=-1)                          # (TB, C)

    @pl.when(si == pl.num_programs(1) - 1)
    def _finalize():
        y = acc_ref[...] * inv_hw                                 # (TB, C)
        s = jax.nn.sigmoid(_channel_mix(y, w_ref[...], use_mxu))
        s_ref[...] = s[:, :, None].astype(s_ref.dtype)            # (TB, C, 1)


def _eca_apply_kernel(x_ref, s_ref, o_ref):
    """Pass 2: re-stream x and apply the per-(batch, channel) scale."""
    o_ref[...] = (x_ref[...].astype(jnp.float32) * s_ref[...]).astype(o_ref.dtype)


# --------------------------------------------------------------------------- #
# wrapper
# --------------------------------------------------------------------------- #
def eca_forward(x, conv_weight, *, vmem_cap_bytes=None, num_cores=None,
                force_two_pass=False):
    """ECANet forward.  x: (B, C, H, W); conv_weight: (C, C, K) Conv1d weight."""
    B, C, H, W = x.shape
    K = conv_weight.shape[-1]
    # Center-tap reduction of the Conv1d is only exact for odd K; the module's
    # kernel-size formula guarantees odd K.
    assert K % 2 == 1, "ECANet Conv1d kernel_size must be odd for the center-tap reduction"
    HW = H * W
    itemsize = x.dtype.itemsize

    # conv1d(padding='same') on a length-1 sequence == matmul with the center tap.
    w_center = conv_weight[:, :, K // 2].astype(jnp.float32)      # (C_out, C_in)
    x_flat = x.reshape(B, C, HW)

    cap, cores = _tpu_query()
    if vmem_cap_bytes is not None:
        cap = int(vmem_cap_bytes)
    if num_cores is not None:
        cores = max(1, int(num_cores))

    use_mxu = C >= 128                       # tiny channel counts stay on the VPU
    per_batch_bytes = C * HW * itemsize

    # Usable VMEM for blocks: ~90% of per-core capacity minus fixed slack.
    usable = int(cap * 0.90) - (4 << 20)
    # Fused path: in + out blocks, both double-buffered -> 4x block per batch elem.
    tb_vmem = usable // (4 * per_batch_bytes) if per_batch_bytes > 0 else 0

    if tb_vmem >= 1 and not force_two_pass:
        # ---- fused single pass: full-spatial blocks of TB batch elements ----
        tb = min(tb_vmem, B)
        if cores > 1 and B > 1:
            # v7x: >= 2 pipelined steps per core for overlap, blocks >= ~2 MiB.
            tb_for_steps = max(1, _ceil_div(B, 2 * cores))
            tb_for_2mib = max(1, _ceil_div(2 << 20, per_batch_bytes))
            tb = min(tb, B, max(tb_for_steps, tb_for_2mib))
        nb = pl.cdiv(B, tb)
        if cores > 1 and nb > 1 and nb % cores != 0:
            # Even out the per-core step count (avoid one core idling a step).
            nb_even = _ceil_div(nb, cores) * cores
            tb = max(1, _ceil_div(B, nb_even))
            nb = pl.cdiv(B, tb)
        block_bytes = tb * per_batch_bytes

        cost = pl.CostEstimate(
            flops=int(2 * B * C * HW + 2 * B * C * C),
            transcendentals=int(B * C),
            bytes_accessed=int(2 * B * C * HW * itemsize + C * C * 4),
        )
        out = pl.pallas_call(
            functools.partial(_eca_fused_kernel, use_mxu=use_mxu),
            out_shape=jax.ShapeDtypeStruct((B, C, HW), x.dtype),
            grid=(nb,),
            in_specs=[
                pl.BlockSpec((tb, C, HW), lambda b: (b, 0, 0)),
                pl.BlockSpec((C, C), lambda b: (0, 0)),
            ],
            out_specs=pl.BlockSpec((tb, C, HW), lambda b: (b, 0, 0)),
            input_output_aliases={0: 0},
            compiler_params=_compiler_params(
                ("parallel",), 4 * block_bytes + (6 << 20), cap),
            cost_estimate=cost,
        )(x_flat, w_center)
        return out.reshape(B, C, H, W)

    # ---- two-pass fallback: spatial tiling (huge H*W / small VMEM, e.g. v7x) ----
    tb = 1
    budget = max(usable, 2 << 20)

    # Pass 1 streams only the input (double-buffered) + f32 masking headroom.
    thw1 = _spatial_tile(HW, max(1, budget // (C * (2 * itemsize + 4))))
    # Pass 2 streams input + output, both double-buffered, + f32 multiply headroom.
    thw2 = _spatial_tile(HW, max(1, budget // (C * (4 * itemsize + 4))))

    ns1 = pl.cdiv(HW, thw1)
    ns2 = pl.cdiv(HW, thw2)
    need_mask = (HW % thw1) != 0

    # pass 1: masked spatial-sum accumulator -> channel mix -> sigmoid (B, C, 1)
    cost1 = pl.CostEstimate(
        flops=int(B * C * HW + 2 * B * C * C),
        transcendentals=int(B * C),
        bytes_accessed=int(B * C * HW * itemsize + C * C * 4 + B * C * 4),
    )
    needed1 = C * thw1 * (2 * itemsize + 4) + (4 << 20)
    scale = pl.pallas_call(
        functools.partial(_eca_scale_kernel, hw=HW, inv_hw=1.0 / float(HW),
                          use_mxu=use_mxu, need_mask=need_mask),
        out_shape=jax.ShapeDtypeStruct((B, C, 1), jnp.float32),
        grid=(B, ns1),
        in_specs=[
            pl.BlockSpec((tb, C, thw1), lambda b, s: (b, 0, s)),
            pl.BlockSpec((C, C), lambda b, s: (0, 0)),
        ],
        out_specs=pl.BlockSpec((tb, C, 1), lambda b, s: (b, 0, 0)),
        scratch_shapes=[pltpu.VMEM((tb, C), jnp.float32)],
        compiler_params=_compiler_params(("parallel", "arbitrary"), needed1, cap),
        cost_estimate=cost1,
    )(x_flat, w_center)

    # pass 2: re-stream x lane-dense and apply the per-channel scale
    cost2 = pl.CostEstimate(
        flops=int(B * C * HW),
        transcendentals=0,
        bytes_accessed=int(2 * B * C * HW * itemsize + B * C * 4),
    )
    needed2 = C * thw2 * (4 * itemsize + 4) + (4 << 20)
    out = pl.pallas_call(
        _eca_apply_kernel,
        out_shape=jax.ShapeDtypeStruct((B, C, HW), x.dtype),
        grid=(B, ns2),
        in_specs=[
            pl.BlockSpec((tb, C, thw2), lambda b, s: (b, 0, s)),
            pl.BlockSpec((tb, C, 1), lambda b, s: (b, 0, 0)),
        ],
        out_specs=pl.BlockSpec((tb, C, thw2), lambda b, s: (b, 0, s)),
        input_output_aliases={0: 0},
        compiler_params=_compiler_params(("parallel", "parallel"), needed2, cap),
        cost_estimate=cost2,
    )(x_flat, scale)
    return out.reshape(B, C, H, W)


def eca_reference(x, conv_weight):
    """Pure-JAX reference mirroring the PyTorch forward."""
    B, C, H, W = x.shape
    K = conv_weight.shape[-1]
    y = jnp.mean(x, axis=(2, 3))                        # (B, C) — avg_pool + view
    w_center = conv_weight[:, :, K // 2]                # (C, C)
    z = y @ w_center.T                                  # conv1d on length-1 seq
    s = jax.nn.sigmoid(z)                               # (B, C)
    return x * s[:, :, None, None]


if __name__ == "__main__":
    # Small shapes consistent with the module: batch=4, channels=8, spatial=16x16.
    B, C, H, W = 4, 8, 16, 16

    # Replicate ECANet.__init__ kernel-size computation (b=1, gamma=2).
    b_param, gamma = 1, 2
    kernel_size = int(abs((math.log(C, 2) + b_param) / gamma))
    if kernel_size % 2 == 0:
        kernel_size += 1                                # -> 3 for C=8

    key = jax.random.PRNGKey(0)
    kx, kw = jax.random.split(key)
    x = jax.random.normal(kx, (B, C, H, W), dtype=jnp.float32)
    # Deterministic Conv1d weight, shape (out_channels, in_channels, kernel_size).
    fan_in = C * kernel_size
    conv_weight = (jax.random.normal(kw, (C, C, kernel_size), dtype=jnp.float32)
                   / math.sqrt(fan_in))

    ref = eca_reference(x, conv_weight)

    # Fused single-pass path (full-spatial, batch-tiled blocks).
    out = jax.block_until_ready(eca_forward(x, conv_weight))
    assert out.shape == (B, C, H, W)
    assert jnp.allclose(out, ref, atol=1e-5, rtol=1e-5), "fused path mismatch"

    # Force the two-pass spatially tiled fallback (what large VGG feature maps /
    # a small per-core VMEM would select) and validate it as well.
    out2 = jax.block_until_ready(eca_forward(x, conv_weight, force_two_pass=True))
    assert jnp.allclose(out2, ref, atol=1e-5, rtol=1e-5), "two-pass path mismatch"

    print("KERNEL_OK")
</pallas_src>

<mosaic_0001>
module attributes {stable_mosaic.version = 11 : i64} {
  func.func @_eca_fused_kernel(%arg0: i32, %arg1: memref<4x8x256xf32, #tpu.memory_space<vmem>>, %arg2: memref<8x8xf32, #tpu.memory_space<vmem>>, %arg3: memref<4x8x256xf32, #tpu.memory_space<vmem>>) attributes {dimension_semantics = [#tpu.dimension_semantics<parallel>], iteration_bounds = array<i64: 1>, scalar_prefetch = 0 : i64, scratch_operands = 0 : i64, tpu.core_type = #tpu.core_type<tc>, window_params = [{transform_indices = @transform_0, window_bounds = array<i64: 4, 8, 256>}, {pipeline_mode = #tpu.pipeline_mode<synchronous>, transform_indices = @transform_1, window_bounds = array<i64: 8, 8>}, {transform_indices = @transform_2, window_bounds = array<i64: 4, 8, 256>}]} {
    %c0 = arith.constant 0 : index
    %c0_0 = arith.constant 0 : index
    %c0_1 = arith.constant 0 : index
    %0 = vector.load %arg1[%c0, %c0_0, %c0_1] : memref<4x8x256xf32, #tpu.memory_space<vmem>>, vector<4x8x256xf32>
    %cst = arith.constant dense<0.000000e+00> : vector<4x8xf32>
    %1 = vector.multi_reduction <add>, %0, %cst [2] : vector<4x8x256xf32> to vector<4x8xf32>
    %cst_2 = arith.constant 2.560000e+02 : f32
    %2 = vector.broadcast %cst_2 : f32 to vector<4x8xf32>
    %3 = arith.divf %1, %2 : vector<4x8xf32>
    %c0_3 = arith.constant 0 : index
    %c0_4 = arith.constant 0 : index
    %4 = vector.load %arg2[%c0_3, %c0_4] : memref<8x8xf32, #tpu.memory_space<vmem>>, vector<8x8xf32>
    %5 = vector.shape_cast %3 : vector<4x8xf32> to vector<4x1x8xf32>
    %6 = vector.shape_cast %4 : vector<8x8xf32> to vector<1x8x8xf32>
    %7 = vector.broadcast %5 : vector<4x1x8xf32> to vector<4x8x8xf32>
    %8 = vector.broadcast %6 : vector<1x8x8xf32> to vector<4x8x8xf32>
    %9 = arith.mulf %7, %8 : vector<4x8x8xf32>
    %cst_5 = arith.constant dense<0.000000e+00> : vector<4x8xf32>
    %10 = vector.multi_reduction <add>, %9, %cst_5 [2] : vector<4x8x8xf32> to vector<4x8xf32>
    %11 = arith.negf %10 : vector<4x8xf32>
    %12 = math.exp %11 : vector<4x8xf32>
    %cst_6 = arith.constant 1.000000e+00 : f32
    %13 = vector.broadcast %cst_6 : f32 to vector<4x8xf32>
    %14 = arith.addf %13, %12 : vector<4x8xf32>
    %15 = arith.divf %13, %14 : vector<4x8xf32>
    %c0_7 = arith.constant 0 : index
    %c0_8 = arith.constant 0 : index
    %c0_9 = arith.constant 0 : index
    %16 = vector.load %arg1[%c0_7, %c0_8, %c0_9] : memref<4x8x256xf32, #tpu.memory_space<vmem>>, vector<4x8x256xf32>
    %17 = vector.shape_cast %15 : vector<4x8xf32> to vector<4x8x1xf32>
    %18 = vector.broadcast %17 : vector<4x8x1xf32> to vector<4x8x256xf32>
    %19 = arith.mulf %16, %18 : vector<4x8x256xf32>
    %c0_10 = arith.constant 0 : index
    %c0_11 = arith.constant 0 : index
    %c0_12 = arith.constant 0 : index
    %20 = vector.load %arg3[%c0_10, %c0_11, %c0_12] : memref<4x8x256xf32, #tpu.memory_space<vmem>>, vector<4x8x256xf32>
    tpu.vector_store %arg3[%c0_10, %c0_11, %c0_12], %19 {strides = array<i32>} : memref<4x8x256xf32, #tpu.memory_space<vmem>>, vector<4x8x256xf32>,
    return
  }
  func.func @transform_0(%arg0: i32) -> (i32, i32, i32) {
    %c0_i32 = arith.constant 0 : i32
    %c0_i32_0 = arith.constant 0 : i32
    %c0_i32_1 = arith.constant 0 : i32
    return %arg0, %c0_i32, %c0_i32_0 : i32, i32, i32
  }
  func.func @transform_1(%arg0: i32) -> (i32, i32) {
    %c0_i32 = arith.constant 0 : i32
    %c0_i32_0 = arith.constant 0 : i32
    %c0_i32_1 = arith.constant 0 : i32
    return %c0_i32, %c0_i32_0 : i32, i32
  }
  func.func @transform_2(%arg0: i32) -> (i32, i32, i32) {
    %c0_i32 = arith.constant 0 : i32
    %c0_i32_0 = arith.constant 0 : i32
    %c0_i32_1 = arith.constant 0 : i32
    return %arg0, %c0_i32, %c0_i32_0 : i32, i32, i32
  }
}

</mosaic_0001>

<llo_original>
// kernel: tpu_custom_call.1
$region0: #{tpu_custom_call.1}
  #allocation0 [shape = 'u32[]', space=smem, size = 0x4, offset = 0x4, fixed_abs, tag = 'smem constant byte address 0x4 - core index']
  #allocation1 [shape = 'u32[72,128]{1,0:T(1,128)}', space=vmem, size = 0x9000, scoped, tag = 'internal scratch']
  %s0 = inlined_call_operand.hbm [shape: f32[4,8,256], index: 0, kind: input, shape index: {}, may-alias: {0,2}]
  %s1 = inlined_call_operand.vmem [shape: f32[8,8], index: 1, kind: input, shape index: {}]
  %s2 = inlined_call_operand.hbm [shape: f32[4,8,256], index: 2, kind: output, shape index: {}, may-alias: {0,2}]
  %s3 = sld [smem:[#allocation0]]
  $region22: #{tpu_custom_call.1} parent=0
    _
  %s5 = ssub.s32 1, %s3
  %s6 = scalar_select 0, %s5, %s3
  $region1: #{tpu_custom_call.1} parent=0
    #allocation2 [shape = 'u8[32768]{0}', space=vmem, size = 0x8000, scoped, tag = 'input window, operand 0, single buffered']
    #allocation3 [shape = 's32[1]{0}', space=sflag, size = 0x4, scoped, tag = 'scoped memory for tpu_custom_call.1']
    #allocation4 [shape = 's32[1]{0}', space=sflag, size = 0x4, scoped, tag = 'scoped memory for tpu_custom_call.1']
    #allocation5 [shape = 'u8[32768]{0}', space=vmem, size = 0x8000, scoped, tag = 'output window, operand 0, single buffered']
    %7 = vsyncpa [#allocation3], 0
    %8 = vsyncpa [#allocation4], 0
    // Predicated region
    $region2: #{tpu_custom_call.1} parent=1 // pred_check
      _
    $region3: #{tpu_custom_call.1} parent=1 // pred_check_branch
      %10 = sbr.rel (0) target = $region5
    $region4: #{tpu_custom_call.1} parent=1 // pred_region
      %12 = vsyncadd [#allocation3], 0
      %s13 = sshll.u32 %s0, 4
      %s14 = int_to_ptr.hbm [resolvable:$true] %s13
      %s15 = sshll.u32 [#allocation2], 4
      %s16 = int_to_ptr.vmem [resolvable:$true] %s15
      %21 = dma.hbm_to_vmem [thread:$0]  %s14, 1024, %s16, [#allocation3], 256, 256, 16
    $region5: #{tpu_custom_call.1} parent=1 // pred_fallthru
      _
    // Predicated region
    $region6: #{tpu_custom_call.1} parent=1 // pred_check
      _
    $region7: #{tpu_custom_call.1} parent=1 // pred_check_branch
      %23 = sbr.rel (0) target = $region9
    $region8: #{tpu_custom_call.1} parent=1 // pred_region
      _
    $region9: #{tpu_custom_call.1} parent=1 // pred_fallthru
      _
    // Predicated region
    $region10: #{tpu_custom_call.1} parent=1 // pred_check
      _
    $region11: #{tpu_custom_call.1} parent=1 // pred_check_branch
      %25 = sbr.rel (0) target = $region13
    $region12: #{tpu_custom_call.1} parent=1 // pred_region
      %27 = dma.done [#allocation3], 1024
    $region13: #{tpu_custom_call.1} parent=1 // pred_fallthru
      _
    %v28 = vld [vmem:[#allocation2] sm:$0xff]
    %v29 = vld [vmem:[#allocation2 + $0x8] sm:$0xff]
    %v30 = vld [vmem:[#allocation2 + $0x10] sm:$0xff]
    %v31 = vld [vmem:[#allocation2 + $0x18] sm:$0xff]
    %v32 = vld [vmem:[#allocation2 + $0x20] sm:$0xff]
    %v33 = vld [vmem:[#allocation2 + $0x28] sm:$0xff]
    %v34 = vld [vmem:[#allocation2 + $0x30] sm:$0xff]
    %v35 = vld [vmem:[#allocation2 + $0x38] sm:$0xff]
    %v36 = vadd.f32 %v28, %v29
    %37 = vadd.xlane.f32.xlu0 %v36
    %v38 = vpop.xlane.xlu0 %37
    %v39 = vadd.f32 %v30, %v31
    %40 = vadd.xlane.f32.xlu0 %v39
    %v41 = vpop.xlane.xlu0 %40
    %v42 = vadd.f32 %v32, %v33
    %43 = vadd.xlane.f32.xlu0 %v42
    %v44 = vpop.xlane.xlu0 %43
    %v45 = vadd.f32 %v34, %v35
    %46 = vadd.xlane.f32.xlu0 %v45
    %v47 = vpop.xlane.xlu0 %46
    %v48 = vrcp.pop 256.0
    %v49 = vmul.f32 256.0, %v48
    %v50 = vsub.f32 1.0, %v49
    %v51 = vmul.f32 %v48, %v50
    %v52 = vadd.f32 %v48, %v51
    %vm53 = vweird.f32 %v48
    %v54 = vsel %vm53, %v48, %v52
    %v55 = vmul.f32 %v38, %v54
    %v56 = vmul.f32 %v41, %v54
    %v57 = vmul.f32 %v44, %v54
    %v58 = vmul.f32 %v47, %v54
    %v59 = vld [vmem:[%s1] sm:$0xff]
    %v61 = vperm.slane %v59, 0
    %v62 = vlaneseq
    %v63 = vshrl.u32 %v62, 7
    %65 = vset.pattern.permute.xlu0 %v63
    %66 = vperm.xlu0 %65, %v61
    %v67 = vpop.permute.xlu0 %66
    %v68 = vperm.slane %v59, 1
    %v69 = vlaneseq
    %v70 = vshrl.u32 %v69, 7
    %72 = vset.pattern.permute.xlu0 %v70
    %73 = vperm.xlu0 %72, %v68
    %v74 = vpop.permute.xlu0 %73
    %v75 = vperm.slane %v59, 2
    %v76 = vlaneseq
    %v77 = vshrl.u32 %v76, 7
    %79 = vset.pattern.permute.xlu0 %v77
    %80 = vperm.xlu0 %79, %v75
    %v81 = vpop.permute.xlu0 %80
    %v82 = vperm.slane %v59, 3
    %v83 = vlaneseq
    %v84 = vshrl.u32 %v83, 7
    %86 = vset.pattern.permute.xlu0 %v84
    %87 = vperm.xlu0 %86, %v82
    %v88 = vpop.permute.xlu0 %87
    %v89 = vperm.slane %v59, 4
    %v90 = vlaneseq
    %v91 = vshrl.u32 %v90, 7
    %93 = vset.pattern.permute.xlu0 %v91
    %94 = vperm.xlu0 %93, %v89
    %v95 = vpop.permute.xlu0 %94
    %v96 = vperm.slane %v59, 5
    %v97 = vlaneseq
    %v98 = vshrl.u32 %v97, 7
    %100 = vset.pattern.permute.xlu0 %v98
    %101 = vperm.xlu0 %100, %v96
    %v102 = vpop.permute.xlu0 %101
    %v103 = vperm.slane %v59, 6
    %v104 = vlaneseq
    %v105 = vshrl.u32 %v104, 7
    %107 = vset.pattern.permute.xlu0 %v105
    %108 = vperm.xlu0 %107, %v103
    %v109 = vpop.permute.xlu0 %108
    %v110 = vperm.slane %v59, 7
    %v111 = vlaneseq
    %v112 = vshrl.u32 %v111, 7
    %114 = vset.pattern.permute.xlu0 %v112
    %115 = vperm.xlu0 %114, %v110
    %v116 = vpop.permute.xlu0 %115
    %v125 = vmul.f32 %v55, %v67
    %v126 = vmul.f32 %v55, %v74
    %v127 = vmul.f32 %v55, %v81
    %v128 = vmul.f32 %v55, %v88
    %v129 = vmul.f32 %v55, %v95
    %v130 = vmul.f32 %v55, %v102
    %v131 = vmul.f32 %v55, %v109
    %v132 = vmul.f32 %v55, %v116
    %v133 = vmul.f32 %v56, %v67
    %v134 = vmul.f32 %v56, %v74
    %v135 = vmul.f32 %v56, %v81
    %v136 = vmul.f32 %v56, %v88
    %v137 = vmul.f32 %v56, %v95
    %v138 = vmul.f32 %v56, %v102
    %v139 = vmul.f32 %v56, %v109
    %v140 = vmul.f32 %v56, %v116
    %v141 = vmul.f32 %v57, %v67
    %v142 = vmul.f32 %v57, %v74
    %v143 = vmul.f32 %v57, %v81
    %v144 = vmul.f32 %v57, %v88
    %v145 = vmul.f32 %v57, %v95
    %v146 = vmul.f32 %v57, %v102
    %v147 = vmul.f32 %v57, %v109
    %v148 = vmul.f32 %v57, %v116
    %v149 = vmul.f32 %v58, %v67
    %v150 = vmul.f32 %v58, %v74
    %v151 = vmul.f32 %v58, %v81
    %v152 = vmul.f32 %v58, %v88
    %v153 = vmul.f32 %v58, %v95
    %v154 = vmul.f32 %v58, %v102
    %v155 = vmul.f32 %v58, %v109
    %v156 = vmul.f32 %v58, %v116
    %189 = vset.pattern.permute.xlu0 0
    %190 = vperm.xlu0 %189, %v125
    %v191 = vpop.permute.xlu0 %190
    %192 = vset.pattern.permute.xlu0 0
    %193 = vperm.xlu0 %192, %v126
    %v194 = vpop.permute.xlu0 %193
    %195 = vset.pattern.permute.xlu0 0
    %196 = vperm.xlu0 %195, %v127
    %v197 = vpop.permute.xlu0 %196
    %198 = vset.pattern.permute.xlu0 0
    %199 = vperm.xlu0 %198, %v128
    %v200 = vpop.permute.xlu0 %199
    %201 = vset.pattern.permute.xlu0 0
    %202 = vperm.xlu0 %201, %v129
    %v203 = vpop.permute.xlu0 %202
    %204 = vset.pattern.permute.xlu0 0
    %205 = vperm.xlu0 %204, %v130
    %v206 = vpop.permute.xlu0 %205
    %207 = vset.pattern.permute.xlu0 0
    %208 = vperm.xlu0 %207, %v131
    %v209 = vpop.permute.xlu0 %208
    %210 = vset.pattern.permute.xlu0 0
    %211 = vperm.xlu0 %210, %v132
    %v212 = vpop.permute.xlu0 %211
    %213 = vset.pattern.permute.xlu0 0
    %214 = vperm.xlu0 %213, %v133
    %v215 = vpop.permute.xlu0 %214
    %216 = vset.pattern.permute.xlu0 0
    %217 = vperm.xlu0 %216, %v134
    %v218 = vpop.permute.xlu0 %217
    %219 = vset.pattern.permute.xlu0 0
    %220 = vperm.xlu0 %219, %v135
    %v221 = vpop.permute.xlu0 %220
    %222 = vset.pattern.permute.xlu0 0
    %223 = vperm.xlu0 %222, %v136
    %v224 = vpop.permute.xlu0 %223
    %225 = vset.pattern.permute.xlu0 0
    %226 = vperm.xlu0 %225, %v137
    %v227 = vpop.permute.xlu0 %226
    %228 = vset.pattern.permute.xlu0 0
    %229 = vperm.xlu0 %228, %v138
    %v230 = vpop.permute.xlu0 %229
    %231 = vset.pattern.permute.xlu0 0
    %232 = vperm.xlu0 %231, %v139
    %v233 = vpop.permute.xlu0 %232
    %234 = vset.pattern.permute.xlu0 0
    %235 = vperm.xlu0 %234, %v140
    %v236 = vpop.permute.xlu0 %235
    %237 = vset.pattern.permute.xlu0 0
    %238 = vperm.xlu0 %237, %v141
    %v239 = vpop.permute.xlu0 %238
    %240 = vset.pattern.permute.xlu0 0
    %241 = vperm.xlu0 %240, %v142
    %v242 = vpop.permute.xlu0 %241
    %243 = vset.pattern.permute.xlu0 0
    %244 = vperm.xlu0 %243, %v143
    %v245 = vpop.permute.xlu0 %244
    %246 = vset.pattern.permute.xlu0 0
    %247 = vperm.xlu0 %246, %v144
    %v248 = vpop.permute.xlu0 %247
    %249 = vset.pattern.permute.xlu0 0
    %250 = vperm.xlu0 %249, %v145
    %v251 = vpop.permute.xlu0 %250
    %252 = vset.pattern.permute.xlu0 0
    %253 = vperm.xlu0 %252, %v146
    %v254 = vpop.permute.xlu0 %253
    %255 = vset.pattern.permute.xlu0 0
    %256 = vperm.xlu0 %255, %v147
    %v257 = vpop.permute.xlu0 %256
    %258 = vset.pattern.permute.xlu0 0
    %259 = vperm.xlu0 %258, %v148
    %v260 = vpop.permute.xlu0 %259
    %261 = vset.pattern.permute.xlu0 0
    %262 = vperm.xlu0 %261, %v149
    %v263 = vpop.permute.xlu0 %262
    %264 = vset.pattern.permute.xlu0 0
    %265 = vperm.xlu0 %264, %v150
    %v266 = vpop.permute.xlu0 %265
    %267 = vset.pattern.permute.xlu0 0
    %268 = vperm.xlu0 %267, %v151
    %v269 = vpop.permute.xlu0 %268
    %270 = vset.pattern.permute.xlu0 0
    %271 = vperm.xlu0 %270, %v152
    %v272 = vpop.permute.xlu0 %271
    %273 = vset.pattern.permute.xlu0 0
    %274 = vperm.xlu0 %273, %v153
    %v275 = vpop.permute.xlu0 %274
    %276 = vset.pattern.permute.xlu0 0
    %277 = vperm.xlu0 %276, %v154
    %v278 = vpop.permute.xlu0 %277
    %279 = vset.pattern.permute.xlu0 0
    %280 = vperm.xlu0 %279, %v155
    %v281 = vpop.permute.xlu0 %280
    %282 = vset.pattern.permute.xlu0 0
    %283 = vperm.xlu0 %282, %v156
    %v284 = vpop.permute.xlu0 %283
    %v285 = vlaneseq
    %v286 = vand.u32 %v285, 127
    %v287 = vperm.slane %v191, %v286
    %v288 = vperm.slane %v194, %v286
    %v289 = vperm.slane %v197, %v286
    %v290 = vperm.slane %v200, %v286
    %v291 = vperm.slane %v203, %v286
    %v292 = vperm.slane %v206, %v286
    %v293 = vperm.slane %v209, %v286
    %v294 = vperm.slane %v212, %v286
    %v295 = vperm.slane %v215, %v286
    %v296 = vperm.slane %v218, %v286
    %v297 = vperm.slane %v221, %v286
    %v298 = vperm.slane %v224, %v286
    %v299 = vperm.slane %v227, %v286
    %v300 = vperm.slane %v230, %v286
    %v301 = vperm.slane %v233, %v286
    %v302 = vperm.slane %v236, %v286
    %v303 = vperm.slane %v239, %v286
    %v304 = vperm.slane %v242, %v286
    %v305 = vperm.slane %v245, %v286
    %v306 = vperm.slane %v248, %v286
    %v307 = vperm.slane %v251, %v286
    %v308 = vperm.slane %v254, %v286
    %v309 = vperm.slane %v257, %v286
    %v310 = vperm.slane %v260, %v286
    %v311 = vperm.slane %v263, %v286
    %v312 = vperm.slane %v266, %v286
    %v313 = vperm.slane %v269, %v286
    %v314 = vperm.slane %v272, %v286
    %v315 = vperm.slane %v275, %v286
    %v316 = vperm.slane %v278, %v286
    %v317 = vperm.slane %v281, %v286
    %v318 = vperm.slane %v284, %v286
    %vm319 = vcmask 1041409
    %v320 = vsel %vm319, %v288, %v287
    %vm321 = vcmask 1042434
    %v322 = vsel %vm321, %v289, %v320
    %vm323 = vcmask 1043459
    %v324 = vsel %vm323, %v290, %v322
    %vm325 = vcmask 1044484
    %v326 = vsel %vm325, %v291, %v324
    %vm327 = vcmask 1045509
    %v328 = vsel %vm327, %v292, %v326
    %vm329 = vcmask 1046534
    %v330 = vsel %vm329, %v293, %v328
    %vm331 = vcmask 1047559
    %v332 = vsel %vm331, %v294, %v330
    %v333 = vsel %vm319, %v296, %v295
    %v334 = vsel %vm321, %v297, %v333
    %v335 = vsel %vm323, %v298, %v334
    %v336 = vsel %vm325, %v299, %v335
    %v337 = vsel %vm327, %v300, %v336
    %v338 = vsel %vm329, %v301, %v337
    %v339 = vsel %vm331, %v302, %v338
    %v340 = vsel %vm319, %v304, %v303
    %v341 = vsel %vm321, %v305, %v340
    %v342 = vsel %vm323, %v306, %v341
    %v343 = vsel %vm325, %v307, %v342
    %v344 = vsel %vm327, %v308, %v343
    %v345 = vsel %vm329, %v309, %v344
    %v346 = vsel %vm331, %v310, %v345
    %v347 = vsel %vm319, %v312, %v311
    %v348 = vsel %vm321, %v313, %v347
    %v349 = vsel %vm323, %v314, %v348
    %v350 = vsel %vm325, %v315, %v349
    %v351 = vsel %vm327, %v316, %v350
    %v352 = vsel %vm329, %v317, %v351
    %v353 = vsel %vm331, %v318, %v352
    %vm358 = vcmask 64512
    %v359 = vsel %vm358, %v332, 0.0
    %360 = vadd.xlane.f32.xlu0 %v359
    %v361 = vpop.xlane.xlu0 %360
    %v362 = vsel %vm358, %v339, 0.0
    %363 = vadd.xlane.f32.xlu0 %v362
    %v364 = vpop.xlane.xlu0 %363
    %v365 = vsel %vm358, %v346, 0.0
    %366 = vadd.xlane.f32.xlu0 %v365
    %v367 = vpop.xlane.xlu0 %366
    %v368 = vsel %vm358, %v353, 0.0
    %369 = vadd.xlane.f32.xlu0 %v368
    %v370 = vpop.xlane.xlu0 %369
    %v371 = vxor.u32 %v361, 2147483648
    %v372 = vxor.u32 %v364, 2147483648
    %v373 = vxor.u32 %v367, 2147483648
    %v374 = vxor.u32 %v370, 2147483648
    %v375 = vmul.f32 %v371, 1.442695
    %v376 = vpow.pop %v375
    %v377 = vmul.f32 %v372, 1.442695
    %v378 = vpow.pop %v377
    %v379 = vmul.f32 %v373, 1.442695
    %v380 = vpow.pop %v379
    %v381 = vmul.f32 %v374, 1.442695
    %v382 = vpow.pop %v381
    %v383 = vadd.f32 %v376, 1.0
    %v384 = vadd.f32 %v378, 1.0
    %v385 = vadd.f32 %v380, 1.0
    %v386 = vadd.f32 %v382, 1.0
    %v387 = vrcp.pop %v383
    %v388 = vmul.f32 %v383, %v387
    %v389 = vsub.f32 1.0, %v388
    %v390 = vmul.f32 %v387, %v389
    %v391 = vadd.f32 %v387, %v390
    %vm392 = vweird.f32 %v383
    %vm393 = vweird.f32 %v387
    %vm394 = vmor %vm392, %vm393
    %v395 = vsel %vm394, %v387, %v391
    %v396 = vand.u32 2147483647, %v383
    %vm397 = vcmp.eq.f32.partialorder %v396, 8.507059e+37
    %v398 = vand.u32 %v383, 2147483648
    %v399 = vor.u32 1.1754944e-38, %v398
    %v400 = vsel %vm397, %v399, %v395
    %v401 = vmul.f32 1.0, %v400
    %v402 = vrcp.pop %v384
    %v403 = vmul.f32 %v384, %v402
    %v404 = vsub.f32 1.0, %v403
    %v405 = vmul.f32 %v402, %v404
    %v406 = vadd.f32 %v402, %v405
    %vm407 = vweird.f32 %v384
    %vm408 = vweird.f32 %v402
    %vm409 = vmor %vm407, %vm408
    %v410 = vsel %vm409, %v402, %v406
    %v411 = vand.u32 2147483647, %v384
    %vm412 = vcmp.eq.f32.partialorder %v411, 8.507059e+37
    %v413 = vand.u32 %v384, 2147483648
    %v414 = vor.u32 1.1754944e-38, %v413
    %v415 = vsel %vm412, %v414, %v410
    %v416 = vmul.f32 1.0, %v415
    %v417 = vrcp.pop %v385
    %v418 = vmul.f32 %v385, %v417
    %v419 = vsub.f32 1.0, %v418
    %v420 = vmul.f32 %v417, %v419
    %v421 = vadd.f32 %v417, %v420
    %vm422 = vweird.f32 %v385
    %vm423 = vweird.f32 %v417
    %vm424 = vmor %vm422, %vm423
    %v425 = vsel %vm424, %v417, %v421
    %v426 = vand.u32 2147483647, %v385
    %vm427 = vcmp.eq.f32.partialorder %v426, 8.507059e+37
    %v428 = vand.u32 %v385, 2147483648
    %v429 = vor.u32 1.1754944e-38, %v428
    %v430 = vsel %vm427, %v429, %v425
    %v431 = vmul.f32 1.0, %v430
    %v432 = vrcp.pop %v386
    %v433 = vmul.f32 %v386, %v432
    %v434 = vsub.f32 1.0, %v433
    %v435 = vmul.f32 %v432, %v434
    %v436 = vadd.f32 %v432, %v435
    %vm437 = vweird.f32 %v386
    %vm438 = vweird.f32 %v432
    %vm439 = vmor %vm437, %vm438
    %v440 = vsel %vm439, %v432, %v436
    %v441 = vand.u32 2147483647, %v386
    %vm442 = vcmp.eq.f32.partialorder %v441, 8.507059e+37
    %v443 = vand.u32 %v386, 2147483648
    %v444 = vor.u32 1.1754944e-38, %v443
    %v445 = vsel %vm442, %v444, %v440
    %v446 = vmul.f32 1.0, %v445
    %v447 = vmul.f32 %v28, %v401
    %v448 = vmul.f32 %v29, %v401
    %v449 = vmul.f32 %v30, %v416
    %v450 = vmul.f32 %v31, %v416
    %v451 = vmul.f32 %v32, %v431
    %v452 = vmul.f32 %v33, %v431
    %v453 = vmul.f32 %v34, %v446
    %v454 = vmul.f32 %v35, %v446
    %455 = vst [vmem:[#allocation5] sm:$0xff] %v447
    %456 = vst [vmem:[#allocation5 + $0x8] sm:$0xff] %v448
    %457 = vst [vmem:[#allocation5 + $0x10] sm:$0xff] %v449
    %458 = vst [vmem:[#allocation5 + $0x18] sm:$0xff] %v450
    %459 = vst [vmem:[#allocation5 + $0x20] sm:$0xff] %v451
    %460 = vst [vmem:[#allocation5 + $0x28] sm:$0xff] %v452
    %461 = vst [vmem:[#allocation5 + $0x30] sm:$0xff] %v453
    %462 = vst [vmem:[#allocation5 + $0x38] sm:$0xff] %v454
    // Predicated region
    $region14: #{tpu_custom_call.1} parent=1 // pred_check
      _
    $region15: #{tpu_custom_call.1} parent=1 // pred_check_branch
      %464 = sbr.rel (0) target = $region17
    $region16: #{tpu_custom_call.1} parent=1 // pred_region
      %466 = vsyncadd [#allocation4], 0
      %s467 = sshll.u32 [#allocation5], 4
      %s468 = int_to_ptr.vmem [resolvable:$true] %s467
      %s469 = sshll.u32 %s2, 4
      %s470 = int_to_ptr.hbm [resolvable:$true] %s469
      %475 = dma.vmem_to_hbm [thread:$0]  %s468, 1024, %s470, [#allocation4], 256, 256, 16
    $region17: #{tpu_custom_call.1} parent=1 // pred_fallthru
      _
    // Predicated region
    $region18: #{tpu_custom_call.1} parent=1 // pred_check
      _
    $region19: #{tpu_custom_call.1} parent=1 // pred_check_branch
      %477 = sbr.rel (0) target = $region21
    $region20: #{tpu_custom_call.1} parent=1 // pred_region
      %479 = dma.done [#allocation4], 1024
    $region21: #{tpu_custom_call.1} parent=1 // pred_fallthru
      _
    %480 = vsyncpa [#allocation3], 1
    %481 = vsyncpa [#allocation4], 1

</llo_original>
